<compile_context>
chip_gen: v5e
topology: v5e:2x2
jax: 0.10.0
libtpu: 0.0.40
codegen_flags: <defaults>
</compile_context>

<pallas_src>
import functools

import jax
import jax.numpy as jnp
from jax.experimental import pallas as pl
from jax.experimental.pallas import tpu as pltpu


# --------------------------------------------------------------------------- kernels


def _resident_kernel(x_ref, g_ref, b_ref, o_ref, *, n_valid, eps):
    """Whole-sample(s) resident path: block (bB, R, 128); per-sample stats via axis
    reductions, two-pass (centered) variance on resident data."""
    x = x_ref[...]                                   # (bB, R, 128), input dtype
    xf = x.astype(jnp.float32)
    n = n_valid                                      # static: true elements / sample
    pad = x.shape[1] * x.shape[2] - n                # static: zero-padded tail size
    denom = max(n - 1, 1)                            # guard the degenerate n==1 case

    # per-sample sum -> mean (two single-axis reduces: lanes then sublanes)
    s = jnp.sum(jnp.sum(xf, axis=2, keepdims=True), axis=1, keepdims=True)  # (bB,1,1)
    mean = s / n
    # centered (two-pass) variance: robust against cancellation for |mean| >> std
    c = xf - mean
    m2 = jnp.sum(jnp.sum(c * c, axis=2, keepdims=True), axis=1, keepdims=True)
    if pad:
        m2 = m2 - pad * mean * mean                  # zero tail contributed pad*mean^2
    var = jnp.maximum(m2 / denom, 0.0)               # torch.std default: unbiased
    inv = 1.0 / (jnp.sqrt(var) + eps)                # eps added to the STD (module semantics)

    y = c * inv
    y = y * g_ref[...] + b_ref[...]                  # (R, gL) broadcasts, gL in {1,128}
    o_ref[...] = y.astype(o_ref.dtype)


def _stats_kernel(x_ref, mean_ref, inv_ref, acc_s, acc_q, *, n_valid, eps):
    """Tiled sweep 1: accumulate per-sample sum / sumsq lane-partials across tiles."""
    t = pl.program_id(1)

    @pl.when(t == 0)
    def _():
        acc_s[...] = jnp.zeros_like(acc_s)
        acc_q[...] = jnp.zeros_like(acc_q)

    xf = x_ref[0].astype(jnp.float32)                # (tR, 128)
    # lane partials (sublane-direction reduce stays mostly on the VALU; the single
    # cross-lane reduce happens once, at the last tile)
    acc_s[...] += jnp.sum(xf, axis=0, keepdims=True)        # (1, 128)
    acc_q[...] += jnp.sum(xf * xf, axis=0, keepdims=True)   # (1, 128)

    @pl.when(t == pl.num_programs(1) - 1)
    def _():
        s = jnp.sum(acc_s[...])
        q = jnp.sum(acc_q[...])
        n = n_valid
        denom = max(n - 1, 1)
        mean = s / n
        # TODO(synk): single-pass var can cancel when |mean| >> std at very large N;
        # switch to a Chan/Welford tile-merge if that regime shows up in practice.
        var = jnp.maximum((q - s * mean) / denom, 0.0)
        inv = 1.0 / (jnp.sqrt(var) + eps)
        mean_ref[...] = jnp.full(mean_ref.shape, mean, jnp.float32)
        inv_ref[...] = jnp.full(inv_ref.shape, inv, jnp.float32)


def _normalize_kernel(x_ref, mean_ref, inv_ref, g_ref, b_ref, o_ref):
    """Tiled sweep 2: re-stream tiles and apply (x - mean) * inv * gamma + beta."""
    xf = x_ref[0].astype(jnp.float32)                # (tR, 128)
    mean = mean_ref[0]                               # (1, 128), same value in all lanes
    inv = inv_ref[0]                                 # (1, 128)
    y = (xf - mean) * inv
    y = y * g_ref[...] + b_ref[...]                  # (tR, gL) broadcasts
    o_ref[0] = y.astype(o_ref.dtype)


# --------------------------------------------------------------------------- helpers


def _vmem_budget_bytes():
    """Scoped-VMEM limit with headroom, derived per TPU generation."""
    try:
        cap = int(pltpu.get_tpu_info().vmem_capacity_bytes)
    except Exception:
        cap = 64 * 1024 * 1024  # conservative fallback (v7x-sized)
    # leave headroom for compiler-internal scratch, semaphores and double buffers:
    # v7x (64 MiB) -> 48 MiB, v5e/v6e (128 MiB) -> 96 MiB
    return min(int(cap * 0.75), 96 * 1024 * 1024)


def _largest_row_tile(R, max_tile_rows):
    """Largest divisor of R that is a multiple of 8 and <= max_tile_rows (R % 8 == 0)."""
    q = R // 8
    cap = max(max_tile_rows // 8, 1)
    best = 1
    i = 1
    while i * i <= q:
        if q % i == 0:
            for d in (i, q // i):
                if d <= cap and d > best:
                    best = d
        i += 1
    return 8 * best


# --------------------------------------------------------------------------- wrapper


def layer_norm(x_nchw, gamma, beta, *, eps=1e-8, affine=True,
               max_resident_bytes=None, tile_rows=None):
    """Per-sample LayerNorm matching the PyTorch module: normalize each sample over
    (C, H, W) with mean and unbiased std (eps added to the std), then per-channel
    affine.  `max_resident_bytes` / `tile_rows` are tuning/debug knobs."""
    B, C, H, W = x_nchw.shape
    HW = H * W
    N = C * HW
    N_pad = -(-N // 1024) * 1024                     # multiple of 8*128 -> (R,128) slab
    R = N_pad // 128
    itemsize = x_nchw.dtype.itemsize

    # pack each sample into a lane-dense (R, 128) slab (zero-pad the tail if needed)
    x_flat = x_nchw.reshape(B, N)
    if N_pad != N:
        x_flat = jnp.pad(x_flat, ((0, 0), (0, N_pad - N)))
    x = x_flat.reshape(B, R, 128)

    # repack gamma/beta into the slab layout
    g = gamma.astype(jnp.float32) if affine else jnp.ones((C,), jnp.float32)
    bt = beta.astype(jnp.float32) if affine else jnp.zeros((C,), jnp.float32)
    if HW % 128 == 0:
        # channel boundaries align with rows -> cheap per-row (R,1) params
        rows_per_c = HW // 128
        g_rows = jnp.repeat(g, rows_per_c)
        b_rows = jnp.repeat(bt, rows_per_c)
        if R > C * rows_per_c:
            g_rows = jnp.pad(g_rows, (0, R - C * rows_per_c))
            b_rows = jnp.pad(b_rows, (0, R - C * rows_per_c))
        g_arr = g_rows.reshape(R, 1)
        b_arr = b_rows.reshape(R, 1)
    else:
        # odd spatial size: channels cut through lanes -> full per-element map
        g_map = jnp.repeat(g, HW)
        b_map = jnp.repeat(bt, HW)
        if N_pad != N:
            g_map = jnp.pad(g_map, (0, N_pad - N))
            b_map = jnp.pad(b_map, (0, N_pad - N))
        g_arr = g_map.reshape(R, 128)
        b_arr = b_map.reshape(R, 128)
    gL = g_arr.shape[1]

    vmem_limit = _vmem_budget_bytes()
    if max_resident_bytes is None:
        # in/out double-buffered (4x) + f32 compute temps -> keep ~8x headroom
        max_resident_bytes = vmem_limit // 8
    sample_f32_bytes = R * 128 * 4
    cparams = dict(vmem_limit_bytes=vmem_limit)

    if sample_f32_bytes <= max_resident_bytes:
        # ---------------- resident single-read path (small / medium samples) --------
        bB = 1
        for d in range(B, 0, -1):                    # pack samples to amortize per-step cost
            if B % d == 0 and d * sample_f32_bytes <= max(max_resident_bytes, sample_f32_bytes):
                bB = d
                break
        out = pl.pallas_call(
            functools.partial(_resident_kernel, n_valid=N, eps=eps),
            out_shape=jax.ShapeDtypeStruct((B, R, 128), x.dtype),
            grid_spec=pltpu.PrefetchScalarGridSpec(
                num_scalar_prefetch=0,
                grid=(B // bB,),
                in_specs=[
                    pl.BlockSpec((bB, R, 128), lambda i: (i, 0, 0)),
                    pl.BlockSpec((R, gL), lambda i: (0, 0)),
                    pl.BlockSpec((R, gL), lambda i: (0, 0)),
                ],
                out_specs=pl.BlockSpec((bB, R, 128), lambda i: (i, 0, 0)),
            ),
            compiler_params=pltpu.CompilerParams(
                dimension_semantics=("parallel",), **cparams),
            cost_estimate=pl.CostEstimate(
                flops=8 * B * N_pad, transcendentals=B,
                bytes_accessed=2 * B * N_pad * itemsize),
        )(x, g_arr, b_arr)
    else:
        # ---------------- tiled two-sweep path (large samples) ----------------------
        # TODO(synk): when B == 1 on v7x, split the stats sweep's row axis across both
        # TensorCores (partial-stat merge) so both HBM paths are used; the normalize
        # sweep below is already fully parallel over (B, tiles).
        tile_target = min(2 * 1024 * 1024, max(vmem_limit // 16, 512 * 1024))
        max_tile_rows = max(8, tile_target // (128 * 4))
        if tile_rows is not None:
            max_tile_rows = tile_rows
        tR = _largest_row_tile(R, max_tile_rows)
        nT = R // tR

        mean_arr, inv_arr = pl.pallas_call(
            functools.partial(_stats_kernel, n_valid=N, eps=eps),
            out_shape=(jax.ShapeDtypeStruct((B, 1, 128), jnp.float32),
                       jax.ShapeDtypeStruct((B, 1, 128), jnp.float32)),
            grid_spec=pltpu.PrefetchScalarGridSpec(
                num_scalar_prefetch=0,
                grid=(B, nT),
                in_specs=[pl.BlockSpec((1, tR, 128), lambda b, t: (b, t, 0))],
                out_specs=[pl.BlockSpec((1, 1, 128), lambda b, t: (b, 0, 0)),
                           pl.BlockSpec((1, 1, 128), lambda b, t: (b, 0, 0))],
                scratch_shapes=[pltpu.VMEM((1, 128), jnp.float32),
                                pltpu.VMEM((1, 128), jnp.float32)],
            ),
            compiler_params=pltpu.CompilerParams(
                dimension_semantics=("parallel", "arbitrary"), **cparams),
            cost_estimate=pl.CostEstimate(
                flops=3 * B * N_pad, transcendentals=B,
                bytes_accessed=B * N_pad * itemsize),
        )(x)

        out = pl.pallas_call(
            _normalize_kernel,
            out_shape=jax.ShapeDtypeStruct((B, R, 128), x.dtype),
            grid_spec=pltpu.PrefetchScalarGridSpec(
                num_scalar_prefetch=0,
                grid=(B, nT),
                in_specs=[
                    pl.BlockSpec((1, tR, 128), lambda b, t: (b, t, 0)),
                    pl.BlockSpec((1, 1, 128), lambda b, t: (b, 0, 0)),
                    pl.BlockSpec((1, 1, 128), lambda b, t: (b, 0, 0)),
                    pl.BlockSpec((tR, gL), lambda b, t: (t, 0)),
                    pl.BlockSpec((tR, gL), lambda b, t: (t, 0)),
                ],
                out_specs=pl.BlockSpec((1, tR, 128), lambda b, t: (b, t, 0)),
            ),
            compiler_params=pltpu.CompilerParams(
                dimension_semantics=("parallel", "parallel"), **cparams),
            cost_estimate=pl.CostEstimate(
                flops=4 * B * N_pad, transcendentals=0,
                bytes_accessed=2 * B * N_pad * itemsize),
        )(x, mean_arr, inv_arr, g_arr, b_arr)

    out_flat = out.reshape(B, N_pad)
    if N_pad != N:
        out_flat = out_flat[:, :N]
    return out_flat.reshape(B, C, H, W)


# --------------------------------------------------------------------------- reference


def _reference(x, gamma, beta, eps=1e-8):
    B = x.shape[0]
    xf = x.reshape(B, -1)
    mean = xf.mean(axis=1).reshape(B, 1, 1, 1)
    std = jnp.std(xf, axis=1, ddof=1).reshape(B, 1, 1, 1)
    y = (x - mean) / (std + eps)
    return y * gamma.reshape(1, -1, 1, 1) + beta.reshape(1, -1, 1, 1)


if __name__ == "__main__":
    key = jax.random.PRNGKey(0)
    kx, kg, kx2, kx3, kg3 = jax.random.split(key, 5)

    # 1) module-sized case (B=2, C=4, 16x16): resident path, per-row affine
    B, C, H, W = 2, 4, 16, 16
    x = jax.random.normal(kx, (B, C, H, W), dtype=jnp.float32)
    gamma = jax.random.uniform(kg, (C,), dtype=jnp.float32)   # nn.Parameter(...).uniform_()
    beta = jnp.zeros((C,), dtype=jnp.float32)                 # torch.zeros(num_features)

    out = layer_norm(x, gamma, beta, eps=1e-8, affine=True)
    out = jax.block_until_ready(out)
    ref = _reference(x, gamma, beta)
    assert out.shape == (B, C, H, W)
    assert jnp.allclose(out, ref, atol=1e-5, rtol=1e-5)

    # 2) exercise the tiled two-sweep path (forced small residency budget, 8 tiles),
    #    also covers the x.size(0) == 1 branch of the module
    B2, C2, H2, W2 = 1, 8, 32, 32
    x2 = jax.random.normal(kx2, (B2, C2, H2, W2), dtype=jnp.float32)
    g2 = jax.random.uniform(kg, (C2,), dtype=jnp.float32)
    b2 = jnp.zeros((C2,), dtype=jnp.float32)
    out2 = layer_norm(x2, g2, b2, eps=1e-8, affine=True,
                      max_resident_bytes=1, tile_rows=8)
    out2 = jax.block_until_ready(out2)
    assert jnp.allclose(out2, _reference(x2, g2, b2), atol=1e-5, rtol=1e-5)

    # 3) odd spatial size (17x17): zero-padded lane-dense slab + per-element affine map
    B3, C3, H3, W3 = 2, 3, 17, 17
    x3 = jax.random.normal(kx3, (B3, C3, H3, W3), dtype=jnp.float32)
    g3 = jax.random.uniform(kg3, (C3,), dtype=jnp.float32)
    b3 = jnp.zeros((C3,), dtype=jnp.float32)
    out3 = layer_norm(x3, g3, b3, eps=1e-8, affine=True)
    out3 = jax.block_until_ready(out3)
    assert jnp.allclose(out3, _reference(x3, g3, b3), atol=1e-5, rtol=1e-5)

    print("KERNEL_OK")
</pallas_src>

<mosaic_0001>
module attributes {stable_mosaic.version = 11 : i64} {
  func.func @_resident_kernel(%arg0: i32, %arg1: memref<2x8x128xf32, #tpu.memory_space<vmem>>, %arg2: memref<8x1xf32, #tpu.memory_space<vmem>>, %arg3: memref<8x1xf32, #tpu.memory_space<vmem>>, %arg4: memref<2x8x128xf32, #tpu.memory_space<vmem>>) attributes {dimension_semantics = [#tpu.dimension_semantics<parallel>], iteration_bounds = array<i64: 1>, scalar_prefetch = 0 : i64, scratch_operands = 0 : i64, tpu.core_type = #tpu.core_type<tc>, window_params = [{transform_indices = @transform_0, window_bounds = array<i64: 2, 8, 128>}, {pipeline_mode = #tpu.pipeline_mode<synchronous>, transform_indices = @transform_1, window_bounds = array<i64: 8, 1>}, {pipeline_mode = #tpu.pipeline_mode<synchronous>, transform_indices = @transform_2, window_bounds = array<i64: 8, 1>}, {transform_indices = @transform_3, window_bounds = array<i64: 2, 8, 128>}]} {
    %c0 = arith.constant 0 : index
    %c0_0 = arith.constant 0 : index
    %c0_1 = arith.constant 0 : index
    %0 = vector.load %arg1[%c0, %c0_0, %c0_1] : memref<2x8x128xf32, #tpu.memory_space<vmem>>, vector<2x8x128xf32>
    %cst = arith.constant dense<0.000000e+00> : vector<2x8xf32>
    %1 = vector.multi_reduction <add>, %0, %cst [2] : vector<2x8x128xf32> to vector<2x8xf32>
    %2 = vector.shape_cast %1 : vector<2x8xf32> to vector<2x8x1xf32>
    %cst_2 = arith.constant dense<0.000000e+00> : vector<2x1xf32>
    %3 = vector.multi_reduction <add>, %2, %cst_2 [1] : vector<2x8x1xf32> to vector<2x1xf32>
    %4 = vector.shape_cast %3 : vector<2x1xf32> to vector<2x1x1xf32>
    %cst_3 = arith.constant 1.024000e+03 : f32
    %5 = vector.broadcast %cst_3 : f32 to vector<2x1x1xf32>
    %6 = arith.divf %4, %5 : vector<2x1x1xf32>
    %7 = vector.broadcast %6 : vector<2x1x1xf32> to vector<2x8x128xf32>
    %8 = arith.subf %0, %7 : vector<2x8x128xf32>
    %9 = arith.mulf %8, %8 : vector<2x8x128xf32>
    %cst_4 = arith.constant dense<0.000000e+00> : vector<2x8xf32>
    %10 = vector.multi_reduction <add>, %9, %cst_4 [2] : vector<2x8x128xf32> to vector<2x8xf32>
    %11 = vector.shape_cast %10 : vector<2x8xf32> to vector<2x8x1xf32>
    %cst_5 = arith.constant dense<0.000000e+00> : vector<2x1xf32>
    %12 = vector.multi_reduction <add>, %11, %cst_5 [1] : vector<2x8x1xf32> to vector<2x1xf32>
    %13 = vector.shape_cast %12 : vector<2x1xf32> to vector<2x1x1xf32>
    %cst_6 = arith.constant 1.023000e+03 : f32
    %14 = vector.broadcast %cst_6 : f32 to vector<2x1x1xf32>
    %15 = arith.divf %13, %14 : vector<2x1x1xf32>
    %cst_7 = arith.constant 0.000000e+00 : f32
    %16 = vector.broadcast %cst_7 : f32 to vector<2x1x1xf32>
    %17 = arith.maximumf %15, %16 : vector<2x1x1xf32>
    %18 = math.sqrt %17 : vector<2x1x1xf32>
    %cst_8 = arith.constant 9.99999993E-9 : f32
    %19 = vector.broadcast %cst_8 : f32 to vector<2x1x1xf32>
    %20 = arith.addf %18, %19 : vector<2x1x1xf32>
    %cst_9 = arith.constant 1.000000e+00 : f32
    %21 = vector.broadcast %cst_9 : f32 to vector<2x1x1xf32>
    %22 = arith.divf %21, %20 : vector<2x1x1xf32>
    %23 = vector.broadcast %22 : vector<2x1x1xf32> to vector<2x8x128xf32>
    %24 = arith.mulf %8, %23 : vector<2x8x128xf32>
    %c0_10 = arith.constant 0 : index
    %c0_11 = arith.constant 0 : index
    %25 = vector.load %arg2[%c0_10, %c0_11] : memref<8x1xf32, #tpu.memory_space<vmem>>, vector<8x1xf32>
    %26 = vector.shape_cast %25 : vector<8x1xf32> to vector<1x8x1xf32>
    %27 = vector.broadcast %26 : vector<1x8x1xf32> to vector<2x8x128xf32>
    %28 = arith.mulf %24, %27 : vector<2x8x128xf32>
    %c0_12 = arith.constant 0 : index
    %c0_13 = arith.constant 0 : index
    %29 = vector.load %arg3[%c0_12, %c0_13] : memref<8x1xf32, #tpu.memory_space<vmem>>, vector<8x1xf32>
    %30 = vector.shape_cast %29 : vector<8x1xf32> to vector<1x8x1xf32>
    %31 = vector.broadcast %30 : vector<1x8x1xf32> to vector<2x8x128xf32>
    %32 = arith.addf %28, %31 : vector<2x8x128xf32>
    %c0_14 = arith.constant 0 : index
    %c0_15 = arith.constant 0 : index
    %c0_16 = arith.constant 0 : index
    %33 = vector.load %arg4[%c0_14, %c0_15, %c0_16] : memref<2x8x128xf32, #tpu.memory_space<vmem>>, vector<2x8x128xf32>
    tpu.vector_store %arg4[%c0_14, %c0_15, %c0_16], %32 {strides = array<i32>} : memref<2x8x128xf32, #tpu.memory_space<vmem>>, vector<2x8x128xf32>,
    return
  }
  func.func @transform_0(%arg0: i32) -> (i32, i32, i32) {
    %c0_i32 = arith.constant 0 : i32
    %c0_i32_0 = arith.constant 0 : i32
    %c0_i32_1 = arith.constant 0 : i32
    return %arg0, %c0_i32, %c0_i32_0 : i32, i32, i32
  }
  func.func @transform_1(%arg0: i32) -> (i32, i32) {
    %c0_i32 = arith.constant 0 : i32
    %c0_i32_0 = arith.constant 0 : i32
    %c0_i32_1 = arith.constant 0 : i32
    return %c0_i32, %c0_i32_0 : i32, i32
  }
  func.func @transform_2(%arg0: i32) -> (i32, i32) {
    %c0_i32 = arith.constant 0 : i32
    %c0_i32_0 = arith.constant 0 : i32
    %c0_i32_1 = arith.constant 0 : i32
    return %c0_i32, %c0_i32_0 : i32, i32
  }
  func.func @transform_3(%arg0: i32) -> (i32, i32, i32) {
    %c0_i32 = arith.constant 0 : i32
    %c0_i32_0 = arith.constant 0 : i32
    %c0_i32_1 = arith.constant 0 : i32
    return %arg0, %c0_i32, %c0_i32_0 : i32, i32, i32
  }
}

</mosaic_0001>

<llo_original>
// kernel: tpu_custom_call.1
$region0: #{tpu_custom_call.1}
  #allocation0 [shape = 'u32[]', space=smem, size = 0x4, offset = 0x4, fixed_abs, tag = 'smem constant byte address 0x4 - core index']
  #allocation1 [shape = 'u32[72,128]{1,0:T(1,128)}', space=vmem, size = 0x9000, scoped, tag = 'internal scratch']
  %s0 = inlined_call_operand.vmem [shape: f32[2,8,128], index: 0, kind: input, shape index: {}]
  %s1 = inlined_call_operand.vmem [shape: f32[8,1], index: 1, kind: input, shape index: {}]
  %s2 = inlined_call_operand.vmem [shape: f32[8,1], index: 2, kind: input, shape index: {}]
  %s3 = inlined_call_operand.hbm [shape: f32[2,8,128], index: 3, kind: output, shape index: {}]
  %s4 = sld [smem:[#allocation0]]
  $region22: #{tpu_custom_call.1} parent=0
    _
  %s6 = ssub.s32 1, %s4
  %s7 = scalar_select 0, %s6, %s4
  $region1: #{tpu_custom_call.1} parent=0
    #allocation2 [shape = 'u8[8192]{0}', space=vmem, size = 0x2000, scoped, tag = 'output window, operand 0, single buffered']
    #allocation3 [shape = 's32[1]{0}', space=sflag, size = 0x4, scoped, tag = 'scoped memory for tpu_custom_call.1']
    %8 = vsyncpa [#allocation3], 0
    // Predicated region
    $region2: #{tpu_custom_call.1} parent=1 // pred_check
      _
    $region3: #{tpu_custom_call.1} parent=1 // pred_check_branch
      %10 = sbr.rel (0) target = $region5
    $region4: #{tpu_custom_call.1} parent=1 // pred_region
      _
    $region5: #{tpu_custom_call.1} parent=1 // pred_fallthru
      _
    // Predicated region
    $region6: #{tpu_custom_call.1} parent=1 // pred_check
      _
    $region7: #{tpu_custom_call.1} parent=1 // pred_check_branch
      %12 = sbr.rel (0) target = $region9
    $region8: #{tpu_custom_call.1} parent=1 // pred_region
      _
    $region9: #{tpu_custom_call.1} parent=1 // pred_fallthru
      _
    // Predicated region
    $region10: #{tpu_custom_call.1} parent=1 // pred_check
      _
    $region11: #{tpu_custom_call.1} parent=1 // pred_check_branch
      %14 = sbr.rel (0) target = $region13
    $region12: #{tpu_custom_call.1} parent=1 // pred_region
      _
    $region13: #{tpu_custom_call.1} parent=1 // pred_fallthru
      _
    %v15 = vld [vmem:[%s0] sm:$0xff]
    %v16 = vld [vmem:[%s0 + $0x8] sm:$0xff]
    %17 = vadd.xlane.f32.xlu0 %v15
    %v18 = vpop.xlane.xlu0 %17
    %19 = vadd.xlane.f32.xlu0 %v16
    %v20 = vpop.xlane.xlu0 %19
    %v21 = vrot.slane %v18, 4
    %v22 = vadd.f32 %v18, %v21
    %v23 = vrot.slane %v22, 2
    %v24 = vadd.f32 %v22, %v23
    %v25 = vrot.slane %v24, 1
    %v26 = vadd.f32 %v24, %v25
    %v27 = vrot.slane %v20, 4
    %v28 = vadd.f32 %v20, %v27
    %v29 = vrot.slane %v28, 2
    %v30 = vadd.f32 %v28, %v29
    %v31 = vrot.slane %v30, 1
    %v32 = vadd.f32 %v30, %v31
    %v33 = vrcp.pop 1024.0
    %v34 = vmul.f32 1024.0, %v33
    %v35 = vsub.f32 1.0, %v34
    %v36 = vmul.f32 %v33, %v35
    %v37 = vadd.f32 %v33, %v36
    %vm38 = vweird.f32 %v33
    %v39 = vsel %vm38, %v33, %v37
    %v40 = vmul.f32 %v26, %v39
    %v41 = vmul.f32 %v32, %v39
    %v42 = vsub.f32 %v15, %v40
    %v43 = vsub.f32 %v16, %v41
    %v44 = vmul.f32 %v42, %v42
    %v45 = vmul.f32 %v43, %v43
    %46 = vadd.xlane.f32.xlu0 %v44
    %v47 = vpop.xlane.xlu0 %46
    %48 = vadd.xlane.f32.xlu0 %v45
    %v49 = vpop.xlane.xlu0 %48
    %v50 = vrot.slane %v47, 4
    %v51 = vadd.f32 %v47, %v50
    %v52 = vrot.slane %v51, 2
    %v53 = vadd.f32 %v51, %v52
    %v54 = vrot.slane %v53, 1
    %v55 = vadd.f32 %v53, %v54
    %v56 = vrot.slane %v49, 4
    %v57 = vadd.f32 %v49, %v56
    %v58 = vrot.slane %v57, 2
    %v59 = vadd.f32 %v57, %v58
    %v60 = vrot.slane %v59, 1
    %v61 = vadd.f32 %v59, %v60
    %v62 = vrcp.pop 1023.0
    %v63 = vmul.f32 1023.0, %v62
    %v64 = vsub.f32 1.0, %v63
    %v65 = vmul.f32 %v62, %v64
    %v66 = vadd.f32 %v62, %v65
    %vm67 = vweird.f32 %v62
    %v68 = vsel %vm67, %v62, %v66
    %v69 = vmul.f32 %v55, %v68
    %v70 = vmul.f32 %v61, %v68
    %v71 = vmax.f32 %v69, 0.0
    %v72 = vmax.f32 %v70, 0.0
    %v73 = vrsqrt.pop %v71
    %v74 = vmul.f32 %v73, %v71
    %v75 = vmul.f32 %v74, %v73
    %v76 = vmul.f32 0.5, %v75
    %v77 = vsub.f32 1.5, %v76
    %v78 = vmul.f32 %v73, %v77
    %v79 = vmul.f32 %v71, %v78
    %vm80 = vcmp.eq.f32.partialorder %v71, inf
    %v81 = vsel %vm80, %v71, %v79
    %vm82 = vcmp.eq.f32.partialorder %v71, 0.0
    %v83 = vand.u32 %v71, 2147483648
    %v84 = vsel %vm82, %v83, %v81
    %v85 = vrsqrt.pop %v72
    %v86 = vmul.f32 %v85, %v72
    %v87 = vmul.f32 %v86, %v85
    %v88 = vmul.f32 0.5, %v87
    %v89 = vsub.f32 1.5, %v88
    %v90 = vmul.f32 %v85, %v89
    %v91 = vmul.f32 %v72, %v90
    %vm92 = vcmp.eq.f32.partialorder %v72, inf
    %v93 = vsel %vm92, %v72, %v91
    %vm94 = vcmp.eq.f32.partialorder %v72, 0.0
    %v95 = vand.u32 %v72, 2147483648
    %v96 = vsel %vm94, %v95, %v93
    %v97 = vadd.f32 %v84, 1e-08
    %v98 = vadd.f32 %v96, 1e-08
    %v99 = vrcp.pop %v97
    %v100 = vmul.f32 %v97, %v99
    %v101 = vsub.f32 1.0, %v100
    %v102 = vmul.f32 %v99, %v101
    %v103 = vadd.f32 %v99, %v102
    %vm104 = vweird.f32 %v97
    %vm105 = vweird.f32 %v99
    %vm106 = vmor %vm104, %vm105
    %v107 = vsel %vm106, %v99, %v103
    %v108 = vand.u32 2147483647, %v97
    %vm109 = vcmp.eq.f32.partialorder %v108, 8.507059e+37
    %v110 = vand.u32 %v97, 2147483648
    %v111 = vor.u32 1.1754944e-38, %v110
    %v112 = vsel %vm109, %v111, %v107
    %v113 = vmul.f32 1.0, %v112
    %v114 = vrcp.pop %v98
    %v115 = vmul.f32 %v98, %v114
    %v116 = vsub.f32 1.0, %v115
    %v117 = vmul.f32 %v114, %v116
    %v118 = vadd.f32 %v114, %v117
    %vm119 = vweird.f32 %v98
    %vm120 = vweird.f32 %v114
    %vm121 = vmor %vm119, %vm120
    %v122 = vsel %vm121, %v114, %v118
    %v123 = vand.u32 2147483647, %v98
    %vm124 = vcmp.eq.f32.partialorder %v123, 8.507059e+37
    %v125 = vand.u32 %v98, 2147483648
    %v126 = vor.u32 1.1754944e-38, %v125
    %v127 = vsel %vm124, %v126, %v122
    %v128 = vmul.f32 1.0, %v127
    %v129 = vmul.f32 %v42, %v113
    %v130 = vmul.f32 %v43, %v128
    %v131 = vld [vmem:[%s1] sm:$0xff]
    %133 = vset.pattern.permute.xlu0 0
    %134 = vperm.xlu0 %133, %v131
    %v135 = vpop.permute.xlu0 %134
    %v137 = vmul.f32 %v129, %v135
    %v138 = vmul.f32 %v130, %v135
    %v139 = vld [vmem:[%s2] sm:$0xff]
    %141 = vset.pattern.permute.xlu0 0
    %142 = vperm.xlu0 %141, %v139
    %v143 = vpop.permute.xlu0 %142
    %v145 = vadd.f32 %v137, %v143
    %v146 = vadd.f32 %v138, %v143
    %147 = vst [vmem:[#allocation2] sm:$0xff] %v145
    %148 = vst [vmem:[#allocation2 + $0x8] sm:$0xff] %v146
    // Predicated region
    $region14: #{tpu_custom_call.1} parent=1 // pred_check
      _
    $region15: #{tpu_custom_call.1} parent=1 // pred_check_branch
      %150 = sbr.rel (0) target = $region17
    $region16: #{tpu_custom_call.1} parent=1 // pred_region
      %152 = vsyncadd [#allocation3], 0
      %s153 = sshll.u32 [#allocation2], 4
      %s154 = int_to_ptr.vmem [resolvable:$true] %s153
      %s155 = sshll.u32 %s3, 4
      %s156 = int_to_ptr.hbm [resolvable:$true] %s155
      %161 = dma.vmem_to_hbm [thread:$0]  %s154, 256, %s156, [#allocation3], 128, 128, 8
    $region17: #{tpu_custom_call.1} parent=1 // pred_fallthru
      _
    // Predicated region
    $region18: #{tpu_custom_call.1} parent=1 // pred_check
      _
    $region19: #{tpu_custom_call.1} parent=1 // pred_check_branch
      %163 = sbr.rel (0) target = $region21
    $region20: #{tpu_custom_call.1} parent=1 // pred_region
      %165 = dma.done [#allocation3], 256
    $region21: #{tpu_custom_call.1} parent=1 // pred_fallthru
      _
    %166 = vsyncpa [#allocation3], 1

</llo_original>
